<compile_context>
chip_gen: v5e
topology: v5e:2x2
jax: 0.10.0
libtpu: 0.0.40
codegen_flags: <defaults>
</compile_context>

<pallas_src>
import functools

import jax
import jax.numpy as jnp
from jax.experimental import pallas as pl
from jax.experimental.pallas import tpu as pltpu

_KT = _KH = _KW = 3                      # CausalConv3d kernel_size = 3


# --------------------------- hardware-aware budgets -------------------------- #

def _vmem_limit_bytes():
    """Generation-aware VMEM limit (v5e/v6e: 128 MiB physical, v7x: 64 MiB)."""
    cap = 64 * 1024 * 1024
    try:
        info = pltpu.get_tpu_info()
        cap = int(getattr(info, "vmem_capacity_bytes", cap)) or cap
    except Exception:
        pass
    return max(32 * 1024 * 1024, min(int(0.6 * cap), 96 * 1024 * 1024))


def _pick_time_tile(T, H, W, Cin, Cout, *, mm_bytes, io_bytes, budget_bytes):
    """Largest divisor of T whose per-(batch, time-tile) working set fits budget."""
    hw = H * W
    hwp = (H + _KH - 1) * (W + _KW - 1)
    per_t = (2 * hw * Cin * io_bytes       # x / h1 input block (double-buffered)
             + 2 * hw * Cin * io_bytes     # residual input block (conv2 kernel)
             + 2 * hw * Cout * io_bytes    # output block (double-buffered)
             + hwp * Cin * 4               # f32 padded activation scratch
             + hw * Cout * 4               # f32 conv accumulator
             + 4 * hw * Cin * 4)           # GN/SiLU/slab/cast temporaries
    resident = _KT * _KH * _KW * (Cin + Cout) * Cout * mm_bytes   # conv weights
    avail = max(budget_bytes - resident, per_t)
    cap = max(1, int(avail // max(per_t, 1)))
    best = 1
    for d in range(1, T + 1):
        if T % d == 0 and d <= cap:
            best = d
    return best


# ------------------------------- Pallas kernels ------------------------------ #

def _channel_moments_kernel(x_ref, sum_ref, ssq_ref):
    """Per-(batch, channel) sum / sum-of-squares over (T, H, W) for GN1 stats."""
    ti = pl.program_id(1)
    x = x_ref[0].astype(jnp.float32)            # (tt, H, W, C)
    c = x.shape[-1]
    xf = x.reshape(-1, c)
    s = jnp.sum(xf, axis=0).reshape(1, 1, c)
    ss = jnp.sum(xf * xf, axis=0).reshape(1, 1, c)

    @pl.when(ti == 0)
    def _():
        sum_ref[...] = s
        ssq_ref[...] = ss

    @pl.when(ti > 0)
    def _():
        sum_ref[...] += s
        ssq_ref[...] += ss


def _gn_silu_causal_conv(x_ref, scale_ref, shift_ref, w_ref, pad_ref, *,
                         tt, H, W, Cin, Cout, KT, KH, KW):
    """GroupNorm-apply + SiLU + causal KTxKHxKW conv for one (batch, time-tile).

    x_ref:       (1, tt, H, W, Cin)        unpadded input tile
    scale/shift: (1, 1, Cin)               folded per-(batch, channel) GN affine
    w_ref:       (KT*KH*KW, Cin, Cout)     conv weights (bf16 in fast mode)
    pad_ref:     (tt+KT-1, H+KH-1, W+KW-1, Cin) persistent f32 padded activation
                 scratch: [0:KT-1] = causal temporal carry, interior = current
                 activated frames, H halo rows zeroed once per batch, W halo
                 columns rewritten (as zeros) with every tile store.
    Returns the conv result (no bias) as an (tt*H*W, Cout) f32 accumulator.
    Relies on the time axis being the innermost, sequentially iterated
    ("arbitrary") grid axis.
    """
    ti = pl.program_id(1)
    ph, pw = KH // 2, KW // 2
    mm_dt = w_ref.dtype

    # GroupNorm apply (global stats folded into scale/shift) + SiLU, in f32.
    x = x_ref[0].astype(jnp.float32)                                  # (tt,H,W,Cin)
    y = x * scale_ref[...].reshape(1, 1, 1, Cin) + shift_ref[...].reshape(1, 1, 1, Cin)
    a = y * jax.nn.sigmoid(y)

    # Zero-pad W in value space (cheap, keeps every scratch store aligned on the
    # tiled (W, C) dims; T/H offsets address untiled dims and are free).
    zw = jnp.zeros((tt, H, pw, Cin), jnp.float32)
    a_p = jnp.concatenate([zw, a, zw], axis=2)                        # (tt,H,W+2pw,Cin)

    @pl.when(ti == 0)
    def _():
        # Zero the H halo rows once per batch, then replicate-pad the first
        # frame into the causal carry slots (F.pad mode='replicate').
        pad_ref[...] = jnp.zeros(pad_ref.shape, pad_ref.dtype)
        pad_ref[0:KT - 1, ph:ph + H, :, :] = jnp.broadcast_to(
            a_p[0:1], (KT - 1, H, W + 2 * pw, Cin))

    # Current tile frames into the scratch interior.
    pad_ref[KT - 1:KT - 1 + tt, ph:ph + H, :, :] = a_p

    # Shift-and-accumulate conv: KT*KH*KW matmuls on static-offset slabs of the
    # padded scratch -- no im2col patch matrix, no lane concatenates.  Slabs are
    # cast to the matmul dtype (bf16 MXU operands); accumulation stays f32.
    M = tt * H * W
    acc = jnp.zeros((M, Cout), jnp.float32)
    for kt in range(KT):
        for kh in range(KH):
            for kw in range(KW):
                slab = pad_ref[kt:kt + tt, kh:kh + H, kw:kw + W, :]
                slab = slab.reshape(M, Cin).astype(mm_dt)
                acc += jnp.dot(slab, w_ref[kt * KH * KW + kh * KW + kw],
                               preferred_element_type=jnp.float32)

    # Carry the last KT-1 activated (padded) frames to the front for the next
    # time tile (load first: handles the tt < KT-1 overlap correctly).
    tail = pad_ref[tt:tt + KT - 1]
    pad_ref[0:KT - 1] = tail
    return acc


def _conv1_kernel(x_ref, scale_ref, shift_ref, w_ref, b_ref,
                  h_ref, hsum_ref, hssq_ref, pad_ref, *,
                  tt, H, W, Cin, Cout, KT, KH, KW):
    """Fused GN1+SiLU+conv1; also accumulates GN2 statistics of its output."""
    acc = _gn_silu_causal_conv(x_ref, scale_ref, shift_ref, w_ref, pad_ref,
                               tt=tt, H=H, W=W, Cin=Cin, Cout=Cout,
                               KT=KT, KH=KH, KW=KW)
    hq = (acc + b_ref[...].astype(jnp.float32)).astype(h_ref.dtype)
    h_ref[...] = hq.reshape(1, tt, H, W, Cout)

    # GN2 statistics from the SAME rounded values conv2 will re-read.
    hr = hq.astype(jnp.float32)
    ts = jnp.sum(hr, axis=0).reshape(1, 1, Cout)
    tss = jnp.sum(hr * hr, axis=0).reshape(1, 1, Cout)
    ti = pl.program_id(1)

    @pl.when(ti == 0)
    def _():
        hsum_ref[...] = ts
        hssq_ref[...] = tss

    @pl.when(ti > 0)
    def _():
        hsum_ref[...] += ts
        hssq_ref[...] += tss


def _conv2_proj_kernel(h_ref, scale_ref, shift_ref, w_ref, b_ref, xres_ref,
                       wsc_ref, o_ref, pad_ref, *,
                       tt, H, W, Cin, Cres, Cout, KT, KH, KW, inv_scale):
    """Fused GN2+SiLU+conv2 + fused 1x1x1 shortcut matmul + residual + scaling."""
    acc = _gn_silu_causal_conv(h_ref, scale_ref, shift_ref, w_ref, pad_ref,
                               tt=tt, H=H, W=W, Cin=Cin, Cout=Cout,
                               KT=KT, KH=KH, KW=KW)
    M = tt * H * W
    # Shortcut projection fused as one more accumulated matmul on the same acc;
    # conv2 + shortcut biases were folded into b_ref by the wrapper.
    xr = xres_ref[0].astype(wsc_ref.dtype).reshape(M, Cres)
    acc += jnp.dot(xr, wsc_ref[...], preferred_element_type=jnp.float32)
    out = (acc + b_ref[...].astype(jnp.float32)) * inv_scale
    o_ref[...] = out.reshape(1, tt, H, W, Cout).astype(o_ref.dtype)


def _conv2_id_kernel(h_ref, scale_ref, shift_ref, w_ref, b_ref, xres_ref,
                     o_ref, pad_ref, *,
                     tt, H, W, Cin, Cout, KT, KH, KW, inv_scale):
    """Fused GN2+SiLU+conv2 + identity shortcut + residual + scaling."""
    acc = _gn_silu_causal_conv(h_ref, scale_ref, shift_ref, w_ref, pad_ref,
                               tt=tt, H=H, W=W, Cin=Cin, Cout=Cout,
                               KT=KT, KH=KH, KW=KW)
    M = tt * H * W
    xr = xres_ref[0].astype(jnp.float32).reshape(M, Cout)
    out = (acc + b_ref[...].astype(jnp.float32) + xr) * inv_scale
    o_ref[...] = out.reshape(1, tt, H, W, Cout).astype(o_ref.dtype)


# ------------------------------ Pallas wrappers ------------------------------ #

def _channel_moments(x, tt, vmem_limit):
    B, T, H, W, C = x.shape
    nt = T // tt
    return pl.pallas_call(
        _channel_moments_kernel,
        out_shape=(jax.ShapeDtypeStruct((B, 1, C), jnp.float32),
                   jax.ShapeDtypeStruct((B, 1, C), jnp.float32)),
        grid=(B, nt),
        in_specs=[pl.BlockSpec((1, tt, H, W, C), lambda b, t: (b, t, 0, 0, 0))],
        out_specs=(pl.BlockSpec((1, 1, C), lambda b, t: (b, 0, 0)),
                   pl.BlockSpec((1, 1, C), lambda b, t: (b, 0, 0))),
        compiler_params=pltpu.CompilerParams(
            dimension_semantics=("parallel", "arbitrary"),
            vmem_limit_bytes=vmem_limit),
    )(x)


def _gn_scale_shift(sums, ssqs, gamma, beta, num_groups, eps, spatial_count):
    """Fold group statistics + affine into per-(batch, channel) scale/shift."""
    B, _, C = sums.shape
    cg = C // num_groups
    count = float(spatial_count * cg)
    s = jnp.sum(sums.reshape(B, num_groups, cg), axis=-1)
    ss = jnp.sum(ssqs.reshape(B, num_groups, cg), axis=-1)
    mean = s / count
    var = ss / count - mean * mean               # biased variance (PyTorch GroupNorm)
    rstd = jax.lax.rsqrt(var + eps)
    mean_c = jnp.repeat(mean, cg, axis=-1)
    rstd_c = jnp.repeat(rstd, cg, axis=-1)
    scale = gamma[None, :].astype(jnp.float32) * rstd_c
    shift = beta[None, :].astype(jnp.float32) - scale * mean_c
    return scale.reshape(B, 1, C), shift.reshape(B, 1, C)


def _norm_act_causal_conv1(x, scale, shift, w, bias, h_dtype, tt, vmem_limit):
    B, T, H, W, Cin = x.shape
    K3, _, Cout = w.shape
    nt = T // tt
    kernel = functools.partial(_conv1_kernel, tt=tt, H=H, W=W, Cin=Cin, Cout=Cout,
                               KT=_KT, KH=_KH, KW=_KW)
    return pl.pallas_call(
        kernel,
        out_shape=(jax.ShapeDtypeStruct((B, T, H, W, Cout), h_dtype),
                   jax.ShapeDtypeStruct((B, 1, Cout), jnp.float32),
                   jax.ShapeDtypeStruct((B, 1, Cout), jnp.float32)),
        grid=(B, nt),
        in_specs=[
            pl.BlockSpec((1, tt, H, W, Cin), lambda b, t: (b, t, 0, 0, 0)),
            pl.BlockSpec((1, 1, Cin), lambda b, t: (b, 0, 0)),
            pl.BlockSpec((1, 1, Cin), lambda b, t: (b, 0, 0)),
            pl.BlockSpec((K3, Cin, Cout), lambda b, t: (0, 0, 0)),
            pl.BlockSpec((1, Cout), lambda b, t: (0, 0)),
        ],
        out_specs=(
            pl.BlockSpec((1, tt, H, W, Cout), lambda b, t: (b, t, 0, 0, 0)),
            pl.BlockSpec((1, 1, Cout), lambda b, t: (b, 0, 0)),
            pl.BlockSpec((1, 1, Cout), lambda b, t: (b, 0, 0)),
        ),
        scratch_shapes=[pltpu.VMEM(
            (tt + _KT - 1, H + _KH - 1, W + _KW - 1, Cin), jnp.float32)],
        compiler_params=pltpu.CompilerParams(
            dimension_semantics=("parallel", "arbitrary"),
            vmem_limit_bytes=vmem_limit),
    )(x, scale, shift, w, bias)


def _norm_act_causal_conv2_residual(h, scale, shift, w, bias, xres, wsc,
                                    inv_scale, out_dtype, tt, vmem_limit):
    B, T, H, W, Cin = h.shape
    K3, _, Cout = w.shape
    Cres = xres.shape[-1]
    nt = T // tt
    in_specs = [
        pl.BlockSpec((1, tt, H, W, Cin), lambda b, t: (b, t, 0, 0, 0)),
        pl.BlockSpec((1, 1, Cin), lambda b, t: (b, 0, 0)),
        pl.BlockSpec((1, 1, Cin), lambda b, t: (b, 0, 0)),
        pl.BlockSpec((K3, Cin, Cout), lambda b, t: (0, 0, 0)),
        pl.BlockSpec((1, Cout), lambda b, t: (0, 0)),
        pl.BlockSpec((1, tt, H, W, Cres), lambda b, t: (b, t, 0, 0, 0)),
    ]
    args = [h, scale, shift, w, bias, xres]
    if wsc is not None:
        kernel = functools.partial(
            _conv2_proj_kernel, tt=tt, H=H, W=W, Cin=Cin, Cres=Cres, Cout=Cout,
            KT=_KT, KH=_KH, KW=_KW, inv_scale=inv_scale)
        in_specs.append(pl.BlockSpec((Cres, Cout), lambda b, t: (0, 0)))
        args.append(wsc)
    else:
        kernel = functools.partial(
            _conv2_id_kernel, tt=tt, H=H, W=W, Cin=Cin, Cout=Cout,
            KT=_KT, KH=_KH, KW=_KW, inv_scale=inv_scale)
    return pl.pallas_call(
        kernel,
        out_shape=jax.ShapeDtypeStruct((B, T, H, W, Cout), out_dtype),
        grid=(B, nt),
        in_specs=in_specs,
        out_specs=pl.BlockSpec((1, tt, H, W, Cout), lambda b, t: (b, t, 0, 0, 0)),
        scratch_shapes=[pltpu.VMEM(
            (tt + _KT - 1, H + _KH - 1, W + _KW - 1, Cin), jnp.float32)],
        compiler_params=pltpu.CompilerParams(
            dimension_semantics=("parallel", "arbitrary"),
            vmem_limit_bytes=vmem_limit),
    )(*args)


def residual_block_3d(x_ncthw, params, *, num_groups=32, eps=1e-6,
                      output_scale_factor=1.0, time_tile=None, use_bf16=True):
    """ResidualBlock3D forward. Input/output in PyTorch NCTHW layout."""
    x = jnp.transpose(x_ncthw, (0, 2, 3, 4, 1))        # NCTHW -> NTHWC
    B, T, H, W, Cin = x.shape
    Cout = params["conv1_b"].shape[0]

    mm_dtype = jnp.bfloat16 if use_bf16 else jnp.float32
    mm_bytes = 2 if use_bf16 else 4
    h_dtype = jnp.bfloat16 if use_bf16 else x.dtype    # largest intermediate
    vmem_limit = _vmem_limit_bytes()

    if time_tile is None:
        time_tile = _pick_time_tile(
            T, H, W, Cin, Cout, mm_bytes=mm_bytes,
            io_bytes=jnp.dtype(x.dtype).itemsize, budget_bytes=vmem_limit // 2)
    tt = time_tile
    assert T % tt == 0, "time tile must divide T"

    # GroupNorm-1 statistics (dedicated reduction pass over x).
    s1, ss1 = _channel_moments(x, tt, vmem_limit)
    scale1, shift1 = _gn_scale_shift(s1, ss1, params["norm1_gamma"],
                                     params["norm1_beta"], num_groups, eps,
                                     T * H * W)

    # Fused GN1+SiLU -> causal conv1 (also emits GN2 statistics of its output).
    w1 = params["conv1_w"].reshape(_KT * _KH * _KW, Cin, Cout).astype(mm_dtype)
    b1 = params["conv1_b"].reshape(1, Cout).astype(jnp.float32)
    h1, s2, ss2 = _norm_act_causal_conv1(x, scale1, shift1, w1, b1, h_dtype,
                                         tt, vmem_limit)
    scale2, shift2 = _gn_scale_shift(s2, ss2, params["norm2_gamma"],
                                     params["norm2_beta"], num_groups, eps,
                                     T * H * W)

    # Fused GN2+SiLU -> causal conv2 -> +shortcut -> *1/output_scale_factor
    # (nn.Dropout(p=0.0) is the identity in eval mode).
    w2 = params["conv2_w"].reshape(_KT * _KH * _KW, Cout, Cout).astype(mm_dtype)
    wsc = params.get("shortcut_w")
    if wsc is not None:
        b2 = (params["conv2_b"] + params["shortcut_b"]).reshape(1, Cout).astype(jnp.float32)
        wsc = wsc.astype(mm_dtype)
    else:
        b2 = params["conv2_b"].reshape(1, Cout).astype(jnp.float32)
    out = _norm_act_causal_conv2_residual(
        h1, scale2, shift2, w2, b2, x, wsc,
        1.0 / float(output_scale_factor), x_ncthw.dtype, tt, vmem_limit)
    return jnp.transpose(out, (0, 4, 1, 2, 3))          # NTHWC -> NCTHW


# ------------------------------ pure-JAX reference --------------------------- #

def _ref_group_norm_silu(x, gamma, beta, num_groups, eps):
    B, T, H, W, C = x.shape
    cg = C // num_groups
    xr = x.reshape(B, T, H, W, num_groups, cg)
    mean = jnp.mean(xr, axis=(1, 2, 3, 5), keepdims=True)
    var = jnp.mean((xr - mean) ** 2, axis=(1, 2, 3, 5), keepdims=True)
    y = ((xr - mean) / jnp.sqrt(var + eps)).reshape(B, T, H, W, C)
    y = y * gamma + beta
    return y * jax.nn.sigmoid(y)


def _ref_causal_conv3d(x, w, b):
    KT, KH, KW, _, _ = w.shape
    xp = jnp.concatenate([jnp.repeat(x[:, :1], KT - 1, axis=1), x], axis=1)
    out = jax.lax.conv_general_dilated(
        xp, w, window_strides=(1, 1, 1),
        padding=((0, 0), (KH // 2, KH // 2), (KW // 2, KW // 2)),
        dimension_numbers=("NDHWC", "DHWIO", "NDHWC"))
    return out + b


def _ref_residual_block(x_nthwc, params, num_groups, eps, scale):
    if params.get("shortcut_w") is not None:
        sc = jnp.einsum("bthwi,io->bthwo", x_nthwc, params["shortcut_w"]) + params["shortcut_b"]
    else:
        sc = x_nthwc
    h = _ref_group_norm_silu(x_nthwc, params["norm1_gamma"], params["norm1_beta"], num_groups, eps)
    h = _ref_causal_conv3d(h, params["conv1_w"], params["conv1_b"])
    h = _ref_group_norm_silu(h, params["norm2_gamma"], params["norm2_beta"], num_groups, eps)
    h = _ref_causal_conv3d(h, params["conv2_w"], params["conv2_b"])
    return (h + sc) / scale


# ------------------------------------ main ----------------------------------- #

if __name__ == "__main__":
    num_groups = 8
    eps = 1e-6

    def make_params(keys, Cin, Cout, projection):
        p = {
            "norm1_gamma": 1.0 + 0.1 * jax.random.normal(keys[1], (Cin,), jnp.float32),
            "norm1_beta": 0.1 * jax.random.normal(keys[2], (Cin,), jnp.float32),
            "conv1_w": 0.1 * jax.random.normal(keys[3], (3, 3, 3, Cin, Cout), jnp.float32),
            "conv1_b": 0.1 * jax.random.normal(keys[4], (Cout,), jnp.float32),
            "norm2_gamma": 1.0 + 0.1 * jax.random.normal(keys[5], (Cout,), jnp.float32),
            "norm2_beta": 0.1 * jax.random.normal(keys[6], (Cout,), jnp.float32),
            "conv2_w": 0.1 * jax.random.normal(keys[7], (3, 3, 3, Cout, Cout), jnp.float32),
            "conv2_b": 0.1 * jax.random.normal(keys[8], (Cout,), jnp.float32),
        }
        if projection:
            p["shortcut_w"] = 0.1 * jax.random.normal(keys[9], (Cin, Cout), jnp.float32)
            p["shortcut_b"] = 0.05 * jax.random.normal(keys[0], (Cout,), jnp.float32)
        return p

    # ---- Test 1: projection shortcut (Cin != Cout), bf16 MXU path, multi-tile carry.
    B, Cin, Cout, T, H, W = 2, 32, 64, 8, 8, 8
    keys = jax.random.split(jax.random.PRNGKey(0), 11)
    x = jax.random.normal(keys[10], (B, Cin, T, H, W), jnp.float32)   # NCTHW
    params = make_params(keys, Cin, Cout, projection=True)

    out = residual_block_3d(x, params, num_groups=num_groups, eps=eps,
                            output_scale_factor=1.0, time_tile=2, use_bf16=True)
    out = jax.block_until_ready(out)
    assert out.shape == (B, Cout, T, H, W), out.shape

    x_nthwc = jnp.transpose(x, (0, 2, 3, 4, 1))
    ref = _ref_residual_block(x_nthwc, params, num_groups, eps, 1.0)
    ref = jnp.transpose(ref, (0, 4, 1, 2, 3))
    rel = float(jnp.max(jnp.abs(out - ref)) / (jnp.max(jnp.abs(ref)) + 1e-6))
    assert rel < 3e-2, f"bf16 path relative max err {rel}"

    # ---- Test 2: identity shortcut (Cin == Cout), f32 parity, multi-tile carry.
    B2, C2, T2, H2, W2 = 2, 32, 8, 8, 8
    keys2 = jax.random.split(jax.random.PRNGKey(1), 11)
    x2 = jax.random.normal(keys2[10], (B2, C2, T2, H2, W2), jnp.float32)
    params2 = make_params(keys2, C2, C2, projection=False)

    out2 = residual_block_3d(x2, params2, num_groups=num_groups, eps=eps,
                             output_scale_factor=2.0, time_tile=4, use_bf16=False)
    out2 = jax.block_until_ready(out2)
    x2_nthwc = jnp.transpose(x2, (0, 2, 3, 4, 1))
    ref2 = _ref_residual_block(x2_nthwc, params2, num_groups, eps, 2.0)
    ref2 = jnp.transpose(ref2, (0, 4, 1, 2, 3))
    max_err2 = float(jnp.max(jnp.abs(out2 - ref2)))
    assert max_err2 < 2e-3, f"f32 path max abs err {max_err2}"

    print("KERNEL_OK")
</pallas_src>

<mosaic_0001>
module attributes {stable_mosaic.version = 11 : i64} {
  func.func @_channel_moments_kernel(%arg0: i32, %arg1: i32, %arg2: memref<1x2x8x8x32xf32, #tpu.memory_space<vmem>>, %arg3: memref<1x1x32xf32, #tpu.memory_space<vmem>>, %arg4: memref<1x1x32xf32, #tpu.memory_space<vmem>>) attributes {dimension_semantics = [#tpu.dimension_semantics<parallel>, #tpu.dimension_semantics<arbitrary>], iteration_bounds = array<i64: 2, 4>, scalar_prefetch = 0 : i64, scratch_operands = 0 : i64, tpu.core_type = #tpu.core_type<tc>, window_params = [{transform_indices = @transform_0, window_bounds = array<i64: 1, 2, 8, 8, 32>}, {transform_indices = @transform_1, window_bounds = array<i64: 1, 1, 32>}, {transform_indices = @transform_2, window_bounds = array<i64: 1, 1, 32>}]} {
    %c0 = arith.constant 0 : index
    %c0_0 = arith.constant 0 : index
    %c0_1 = arith.constant 0 : index
    %c0_2 = arith.constant 0 : index
    %c0_3 = arith.constant 0 : index
    %0 = vector.load %arg2[%c0, %c0_0, %c0_1, %c0_2, %c0_3] : memref<1x2x8x8x32xf32, #tpu.memory_space<vmem>>, vector<1x2x8x8x32xf32>
    %1 = vector.shape_cast %0 : vector<1x2x8x8x32xf32> to vector<2x8x8x32xf32>
    %2 = vector.shape_cast %1 : vector<2x8x8x32xf32> to vector<128x32xf32>
    %cst = arith.constant dense<0.000000e+00> : vector<32xf32>
    %3 = vector.multi_reduction <add>, %2, %cst [0] : vector<128x32xf32> to vector<32xf32>
    %4 = vector.shape_cast %3 : vector<32xf32> to vector<1x1x32xf32>
    %5 = arith.mulf %2, %2 : vector<128x32xf32>
    %cst_4 = arith.constant dense<0.000000e+00> : vector<32xf32>
    %6 = vector.multi_reduction <add>, %5, %cst_4 [0] : vector<128x32xf32> to vector<32xf32>
    %7 = vector.shape_cast %6 : vector<32xf32> to vector<1x1x32xf32>
    %c0_i32 = arith.constant 0 : i32
    %8 = arith.cmpi eq, %arg1, %c0_i32 : i32
    %9 = arith.extui %8 : i1 to i32
    %c0_i32_5 = arith.constant 0 : i32
    %10 = arith.cmpi ne, %9, %c0_i32_5 : i32
    scf.if %10 {
      %c0_8 = arith.constant 0 : index
      %c0_9 = arith.constant 0 : index
      %c0_10 = arith.constant 0 : index
      %14 = vector.load %arg3[%c0_8, %c0_9, %c0_10] : memref<1x1x32xf32, #tpu.memory_space<vmem>>, vector<1x1x32xf32>
      tpu.vector_store %arg3[%c0_8, %c0_9, %c0_10], %4 {strides = array<i32>} : memref<1x1x32xf32, #tpu.memory_space<vmem>>, vector<1x1x32xf32>,
      %c0_11 = arith.constant 0 : index
      %c0_12 = arith.constant 0 : index
      %c0_13 = arith.constant 0 : index
      %15 = vector.load %arg4[%c0_11, %c0_12, %c0_13] : memref<1x1x32xf32, #tpu.memory_space<vmem>>, vector<1x1x32xf32>
      tpu.vector_store %arg4[%c0_11, %c0_12, %c0_13], %7 {strides = array<i32>} : memref<1x1x32xf32, #tpu.memory_space<vmem>>, vector<1x1x32xf32>,
    } else {
    }
    %c0_i32_6 = arith.constant 0 : i32
    %11 = arith.cmpi sgt, %arg1, %c0_i32_6 : i32
    %12 = arith.extui %11 : i1 to i32
    %c0_i32_7 = arith.constant 0 : i32
    %13 = arith.cmpi ne, %12, %c0_i32_7 : i32
    scf.if %13 {
      %c0_8 = arith.constant 0 : index
      %c0_9 = arith.constant 0 : index
      %c0_10 = arith.constant 0 : index
      %14 = vector.load %arg3[%c0_8, %c0_9, %c0_10] : memref<1x1x32xf32, #tpu.memory_space<vmem>>, vector<1x1x32xf32>
      %15 = arith.addf %14, %4 : vector<1x1x32xf32>
      %c0_11 = arith.constant 0 : index
      %c0_12 = arith.constant 0 : index
      %c0_13 = arith.constant 0 : index
      %16 = vector.load %arg3[%c0_11, %c0_12, %c0_13] : memref<1x1x32xf32, #tpu.memory_space<vmem>>, vector<1x1x32xf32>
      tpu.vector_store %arg3[%c0_11, %c0_12, %c0_13], %15 {strides = array<i32>} : memref<1x1x32xf32, #tpu.memory_space<vmem>>, vector<1x1x32xf32>,
      %c0_14 = arith.constant 0 : index
      %c0_15 = arith.constant 0 : index
      %c0_16 = arith.constant 0 : index
      %17 = vector.load %arg4[%c0_14, %c0_15, %c0_16] : memref<1x1x32xf32, #tpu.memory_space<vmem>>, vector<1x1x32xf32>
      %18 = arith.addf %17, %7 : vector<1x1x32xf32>
      %c0_17 = arith.constant 0 : index
      %c0_18 = arith.constant 0 : index
      %c0_19 = arith.constant 0 : index
      %19 = vector.load %arg4[%c0_17, %c0_18, %c0_19] : memref<1x1x32xf32, #tpu.memory_space<vmem>>, vector<1x1x32xf32>
      tpu.vector_store %arg4[%c0_17, %c0_18, %c0_19], %18 {strides = array<i32>} : memref<1x1x32xf32, #tpu.memory_space<vmem>>, vector<1x1x32xf32>,
    } else {
    }
    return
  }
  func.func @transform_0(%arg0: i32, %arg1: i32) -> (i32, i32, i32, i32, i32) {
    %c0_i32 = arith.constant 0 : i32
    %c0_i32_0 = arith.constant 0 : i32
    %c0_i32_1 = arith.constant 0 : i32
    %c0_i32_2 = arith.constant 0 : i32
    return %arg0, %arg1, %c0_i32, %c0_i32_0, %c0_i32_1 : i32, i32, i32, i32, i32
  }
  func.func @transform_1(%arg0: i32, %arg1: i32) -> (i32, i32, i32) {
    %c0_i32 = arith.constant 0 : i32
    %c0_i32_0 = arith.constant 0 : i32
    %c0_i32_1 = arith.constant 0 : i32
    return %arg0, %c0_i32, %c0_i32_0 : i32, i32, i32
  }
  func.func @transform_2(%arg0: i32, %arg1: i32) -> (i32, i32, i32) {
    %c0_i32 = arith.constant 0 : i32
    %c0_i32_0 = arith.constant 0 : i32
    %c0_i32_1 = arith.constant 0 : i32
    return %arg0, %c0_i32, %c0_i32_0 : i32, i32, i32
  }
}

</mosaic_0001>

<llo_original>
// kernel: tpu_custom_call.1
$region0: #{tpu_custom_call.1}
  #allocation0 [shape = 'u32[]', space=smem, size = 0x4, offset = 0x4, fixed_abs, tag = 'smem constant byte address 0x4 - core index']
  #allocation1 [shape = 'u32[72,128]{1,0:T(1,128)}', space=vmem, size = 0x9000, scoped, tag = 'internal scratch']
  %s0 = inlined_call_operand.hbm [shape: f32[2,8,8,8,32], index: 0, kind: input, shape index: {}]
  %s1 = inlined_call_operand.hbm [shape: f32[2,1,32], index: 1, kind: output, shape index: {0}]
  %s2 = inlined_call_operand.hbm [shape: f32[2,1,32], index: 2, kind: output, shape index: {1}]
  %3 = xla_tuple %s1, %s2
  %s4 = sld [smem:[#allocation0]]
  $region57: #{tpu_custom_call.1} parent=0
    _
  %s6 = ssub.s32 1, %s4
  %s7 = scalar_select 0, %s6, %s4
  $region1: #{tpu_custom_call.1} parent=0
    #allocation2 [shape = 'u8[131072]{0}', space=vmem, size = 0x20000, scoped, tag = 'input window, operand 0']
    #allocation3 [shape = 's32[2]{0}', space=sflag, size = 0x8, scoped, tag = 'scoped memory for tpu_custom_call.1']
    #allocation4 [shape = 's32[2]{0}', space=sflag, size = 0x8, scoped, tag = 'scoped memory for tpu_custom_call.1']
    #allocation5 [shape = 'u8[1024]{0}', space=vmem, size = 0x400, scoped, tag = 'output window, operand 0']
    #allocation6 [shape = 'u8[1024]{0}', space=vmem, size = 0x400, scoped, tag = 'output window, operand 1']
    #allocation7 [shape = 's32[2]{0}', space=sflag, size = 0x8, scoped, tag = 'scoped memory for tpu_custom_call.1']
    %8 = vsyncpa [#allocation3], 0
    %s9 = scalar_lea.sflag [#allocation3], 1
    %10 = vsyncpa %s9, 0
    %11 = vsyncpa [#allocation4], 0
    %s12 = scalar_lea.sflag [#allocation4], 1
    %13 = vsyncpa %s12, 0
    %14 = vsyncpa [#allocation7], 0
    %s15 = scalar_lea.sflag [#allocation7], 1
    %16 = vsyncpa %s15, 0
    loop: start=0, step=1, limit=10
    $region2: #{tpu_custom_call.1} parent=1 // loop_pre_header
      _
    $region3: #{tpu_custom_call.1} parent=1 // loop_header
      %s18 = sphi 0, %s22
      %p19 = scmp.ge.s32.totalorder %s18, 10
      %s25 = sphi 0, %s37
      %s26 = sphi 0, %s33
      %s27 = sphi 0, %s25
      %s28 = sphi 0, %s26
      %s29 = sphi 0, %s27
      %s30 = sphi 0, %s28
      %s42 = sphi 0, %s44
      %s45 = sphi 0, %s42
      %s46 = sphi 0, %s45
      %s62 = sphi 0, %s46
      %s68 = sphi 0, %s70
      %s71 = sphi 0, %s68
      %s72 = sphi 0, %s71
      %s88 = sphi 0, %s72
      %s94 = sphi 0, %s96
      %s97 = sphi 0, %s94
      %s98 = sphi 0, %s97
      %s114 = sphi 0, %s98
    $region4: #{tpu_custom_call.1} parent=1 // loop_header_branch
      %21 = sbr.rel (%p19) target = $region8
    $region5: #{tpu_custom_call.1} parent=1 // loop_body
      %s23 = ssub.s32 %s18, 1
      %s24 = ssub.s32 %s18, 2
      %s31 = sadd.s32 1, %s26
      %p32 = scmp.ge.s32.totalorder %s31, 4
      %s33 = scalar_select %p32, 0, %s31
      %s34 = sadd.s32 1, %s25
      %s35 = scalar_select %p32, %s34, %s25
      %p36 = scmp.ge.s32.totalorder %s35, 2
      %s37 = scalar_select %p36, 0, %s35
      %s38 = ssub.s32 %s25, %s37
      %s39 = ssub.s32 %s26, %s33
      %s40 = sor.u32 %s38, %s39
      %p41 = scmp.eq.s32.totalorder %s40, 0
      %s43 = sadd.s32 %s42, 1
      %s44 = scalar_select %p41, %s42, %s43
      %p47 = pneg %p41
      %p48 = scmp.eq.s32.totalorder %s18, 7
      %p49 = por %p47, %p48
      %p50 = scmp.ne.s32.totalorder %s42, %s45
      %p51 = scmp.eq.s32.totalorder %s18, 0
      %p52 = por %p50, %p51
      %p53 = scmp.ne.s32.totalorder %s42, %s45
      %p54 = scmp.eq.s32.totalorder %s23, 7
      %p55 = por %p53, %p54
      %p56 = scmp.ne.s32.totalorder %s45, %s46
      %p57 = scmp.eq.s32.totalorder %s23, 0
      %p58 = por %p56, %p57
      %p59 = scmp.ne.s32.totalorder %s45, %s46
      %p60 = scmp.eq.s32.totalorder %s24, 7
      %p61 = por %p59, %p60
      %p63 = scmp.ne.s32.totalorder %s46, %s62
      %p64 = scmp.eq.s32.totalorder %s24, 0
      %p65 = por %p63, %p64
      %s66 = ssub.s32 %s25, %s37
      %p67 = scmp.eq.s32.totalorder %s66, 0
      %s69 = sadd.s32 %s68, 1
      %s70 = scalar_select %p67, %s68, %s69
      %p73 = pneg %p67
      %p74 = scmp.eq.s32.totalorder %s18, 7
      %p75 = por %p73, %p74
      %p76 = scmp.ne.s32.totalorder %s68, %s71
      %p77 = scmp.eq.s32.totalorder %s18, 0
      %p78 = por %p76, %p77
      %p79 = scmp.ne.s32.totalorder %s68, %s71
      %p80 = scmp.eq.s32.totalorder %s23, 7
      %p81 = por %p79, %p80
      %p82 = scmp.ne.s32.totalorder %s71, %s72
      %p83 = scmp.eq.s32.totalorder %s23, 0
      %p84 = por %p82, %p83
      %p85 = scmp.ne.s32.totalorder %s71, %s72
      %p86 = scmp.eq.s32.totalorder %s24, 7
      %p87 = por %p85, %p86
      %p89 = scmp.ne.s32.totalorder %s72, %s88
      %p90 = scmp.eq.s32.totalorder %s24, 0
      %p91 = por %p89, %p90
      %s92 = ssub.s32 %s25, %s37
      %p93 = scmp.eq.s32.totalorder %s92, 0
      %s95 = sadd.s32 %s94, 1
      %s96 = scalar_select %p93, %s94, %s95
      %p99 = pneg %p93
      %p100 = scmp.eq.s32.totalorder %s18, 7
      %p101 = por %p99, %p100
      %p102 = scmp.ne.s32.totalorder %s94, %s97
      %p103 = scmp.eq.s32.totalorder %s18, 0
      %p104 = por %p102, %p103
      %p105 = scmp.ne.s32.totalorder %s94, %s97
      %p106 = scmp.eq.s32.totalorder %s23, 7
      %p107 = por %p105, %p106
      %p108 = scmp.ne.s32.totalorder %s97, %s98
      %p109 = scmp.eq.s32.totalorder %s23, 0
      %p110 = por %p108, %p109
      %p111 = scmp.ne.s32.totalorder %s97, %s98
      %p112 = scmp.eq.s32.totalorder %s24, 7
      %p113 = por %p111, %p112
      %p115 = scmp.ne.s32.totalorder %s98, %s114
      %p116 = scmp.eq.s32.totalorder %s24, 0
      %p117 = por %p115, %p116
      %p118 = scmp.le.s32.totalorder 1, %s18
      %p119 = scmp.lt.s32.totalorder %s18, 9
      %p120 = pnand %p118, %p119
      %p121 = pneg %p120
      // Predicated region
      $region9: #{tpu_custom_call.1} parent=5 // pred_check
        _
      $region10: #{tpu_custom_call.1} parent=5 // pred_check_branch
        %123 = sbr.rel (%p120) target = $region12
      $region11: #{tpu_custom_call.1} parent=5 // pred_region
        %s124 = ssub.s32 %s18, 1
      $region12: #{tpu_custom_call.1} parent=5 // pred_fallthru
        _
      %p125 = scmp.lt.s32.totalorder %s18, 8
      // Predicated region
      $region13: #{tpu_custom_call.1} parent=5 // pred_check
        %p126 = pneg %p125
      $region14: #{tpu_custom_call.1} parent=5 // pred_check_branch
        %128 = sbr.rel (%p126) target = $region16
      $region15: #{tpu_custom_call.1} parent=5 // pred_region
        // Predicated region
        $region17: #{tpu_custom_call.1} parent=15 // pred_check
          %p129 = pneg %p52
        $region18: #{tpu_custom_call.1} parent=15 // pred_check_branch
          %131 = sbr.rel (%p129) target = $region20
        $region19: #{tpu_custom_call.1} parent=15 // pred_region
          %s132 = sand.u32 %s42, 1
          %s133 = scalar_lea.sflag [#allocation3], %s132
          %s134 = sand.u32 %s42, 1
          %s135 = smul.addr %s134, 128
          %s136 = scalar_lea.vmem [#allocation2], %s135
          %s137 = smul.u32 2, %s26
          %139 = vsyncadd %s133, 0
          %s140 = smul.addr %s137, 8
          %s141 = smul.addr %s25, 64
          %s142 = sadd.s32 %s140, %s141
          %s143 = smul.addr %s142, 8
          %s144 = scalar_lea.hbm %s0, %s143
          %s145 = sshll.u32 %s144, 4
          %s146 = int_to_ptr.hbm [resolvable:$true] %s145
          %s147 = sshll.u32 %s136, 4
          %s148 = int_to_ptr.vmem [resolvable:$true] %s147
          %153 = dma.hbm_to_vmem [thread:$0]  %s146, 2048, %s148, %s133, 128, 128, 8
        $region20: #{tpu_custom_call.1} parent=15 // pred_fallthru
          _
      $region16: #{tpu_custom_call.1} parent=5 // pred_fallthru
        _
      %p154 = scmp.le.s32.totalorder 1, %s18
      %p155 = scmp.lt.s32.totalorder %s18, 9
      %p156 = pnand %p154, %p155
      %p157 = pneg %p156
      // Predicated region
      $region21: #{tpu_custom_call.1} parent=5 // pred_check
        _
      $region22: #{tpu_custom_call.1} parent=5 // pred_check_branch
        %159 = sbr.rel (%p156) target = $region24
      $region23: #{tpu_custom_call.1} parent=5 // pred_region
        %s160 = ssub.s32 %s18, 1
        %s161 = sand.u32 %s45, 1
        %s162 = scalar_lea.sflag [#allocation3], %s161
        %s163 = sand.u32 %s45, 1
        %s164 = smul.addr %s163, 128
        %s165 = scalar_lea.vmem [#allocation2], %s164
        // Predicated region
        $region25: #{tpu_custom_call.1} parent=23 // pred_check
          %p166 = pneg %p58
        $region26: #{tpu_custom_call.1} parent=23 // pred_check_branch
          %168 = sbr.rel (%p166) target = $region28
        $region27: #{tpu_custom_call.1} parent=23 // pred_region
          %170 = dma.done %s162, 2048
        $region28: #{tpu_custom_call.1} parent=23 // pred_fallthru
          _
        %s171 = sand.u32 %s45, 1
        %s172 = scalar_lea.sflag [#allocation3], %s171
        %s173 = sand.u32 %s45, 1
        %s174 = smul.addr %s173, 128
        %s175 = scalar_lea.vmem [#allocation2], %s174
        %p176 = pneg %p58
        %p177 = pneg %p55
        %p178 = pneg %p84
        %p179 = pneg %p81
        %s180 = sand.u32 %s71, 1
        %s181 = scalar_lea.sflag [#allocation4], %s180
        %s182 = sand.u32 %s71, 1
        %s183 = scalar_lea.vmem [#allocation5], %s182
        %p184 = pneg %p110
        %p185 = pneg %p107
        %s186 = sand.u32 %s97, 1
        %s187 = scalar_lea.sflag [#allocation7], %s186
        %s188 = sand.u32 %s97, 1
        %s189 = scalar_lea.vmem [#allocation6], %s188
        %s190 = smul.u32 2, %s28
        %v191 = vld [vmem:[%s165] sm:$0xff]
        %v192 = vld [vmem:[%s165 + $0x8] sm:$0xff]
        %v193 = vld [vmem:[%s165 + $0x10] sm:$0xff]
        %v194 = vld [vmem:[%s165 + $0x18] sm:$0xff]
        %v195 = vld [vmem:[%s165 + $0x20] sm:$0xff]
        %v196 = vld [vmem:[%s165 + $0x28] sm:$0xff]
        %v197 = vld [vmem:[%s165 + $0x30] sm:$0xff]
        %v198 = vld [vmem:[%s165 + $0x38] sm:$0xff]
        %v199 = vld [vmem:[%s165 + $0x40] sm:$0xff]
        %v200 = vld [vmem:[%s165 + $0x48] sm:$0xff]
        %v201 = vld [vmem:[%s165 + $0x50] sm:$0xff]
        %v202 = vld [vmem:[%s165 + $0x58] sm:$0xff]
        %v203 = vld [vmem:[%s165 + $0x60] sm:$0xff]
        %v204 = vld [vmem:[%s165 + $0x68] sm:$0xff]
        %v205 = vld [vmem:[%s165 + $0x70] sm:$0xff]
        %v206 = vld [vmem:[%s165 + $0x78] sm:$0xff]
        %vm207 = vcmask 261120
        %v208 = vsel %vm207, %v191, 0.0
        %v209 = vsel %vm207, %v192, 0.0
        %v210 = vadd.f32 %v208, %v209
        %v211 = vsel %vm207, %v193, 0.0
        %v212 = vadd.f32 %v210, %v211
        %v213 = vsel %vm207, %v194, 0.0
        %v214 = vadd.f32 %v212, %v213
        %v215 = vsel %vm207, %v195, 0.0
        %v216 = vadd.f32 %v214, %v215
        %v217 = vsel %vm207, %v196, 0.0
        %v218 = vadd.f32 %v216, %v217
        %v219 = vsel %vm207, %v197, 0.0
        %v220 = vadd.f32 %v218, %v219
        %v221 = vsel %vm207, %v198, 0.0
        %v222 = vadd.f32 %v220, %v221
        %v223 = vsel %vm207, %v199, 0.0
        %v224 = vadd.f32 %v222, %v223
        %v225 = vsel %vm207, %v200, 0.0
        %v226 = vadd.f32 %v224, %v225
        %v227 = vsel %vm207, %v201, 0.0
        %v228 = vadd.f32 %v226, %v227
        %v229 = vsel %vm207, %v202, 0.0
        %v230 = vadd.f32 %v228, %v229
        %v231 = vsel %vm207, %v203, 0.0
        %v232 = vadd.f32 %v230, %v231
        %v233 = vsel %vm207, %v204, 0.0
        %v234 = vadd.f32 %v232, %v233
        %v235 = vsel %vm207, %v205, 0.0
        %v236 = vadd.f32 %v234, %v235
        %v237 = vsel %vm207, %v206, 0.0
        %v238 = vadd.f32 %v236, %v237
        %v239 = vrot.slane %v238, 4
        %v240 = vadd.f32 %v238, %v239
        %v241 = vrot.slane %v240, 2
        %v242 = vadd.f32 %v240, %v241
        %v243 = vrot.slane %v242, 1
        %v244 = vadd.f32 %v242, %v243
        %v245 = vmul.f32 %v191, %v191
        %v246 = vmul.f32 %v192, %v192
        %v247 = vmul.f32 %v193, %v193
        %v248 = vmul.f32 %v194, %v194
        %v249 = vmul.f32 %v195, %v195
        %v250 = vmul.f32 %v196, %v196
        %v251 = vmul.f32 %v197, %v197
        %v252 = vmul.f32 %v198, %v198
        %v253 = vmul.f32 %v199, %v199
        %v254 = vmul.f32 %v200, %v200
        %v255 = vmul.f32 %v201, %v201
        %v256 = vmul.f32 %v202, %v202
        %v257 = vmul.f32 %v203, %v203
        %v258 = vmul.f32 %v204, %v204
        %v259 = vmul.f32 %v205, %v205
        %v260 = vmul.f32 %v206, %v206
        %v261 = vsel %vm207, %v245, 0.0
        %v262 = vsel %vm207, %v246, 0.0
        %v263 = vadd.f32 %v261, %v262
        %v264 = vsel %vm207, %v247, 0.0
        %v265 = vadd.f32 %v263, %v264
        %v266 = vsel %vm207, %v248, 0.0
        %v267 = vadd.f32 %v265, %v266
        %v268 = vsel %vm207, %v249, 0.0
        %v269 = vadd.f32 %v267, %v268
        %v270 = vsel %vm207, %v250, 0.0
        %v271 = vadd.f32 %v269, %v270
        %v272 = vsel %vm207, %v251, 0.0
        %v273 = vadd.f32 %v271, %v272
        %v274 = vsel %vm207, %v252, 0.0
        %v275 = vadd.f32 %v273, %v274
        %v276 = vsel %vm207, %v253, 0.0
        %v277 = vadd.f32 %v275, %v276
        %v278 = vsel %vm207, %v254, 0.0
        %v279 = vadd.f32 %v277, %v278
        %v280 = vsel %vm207, %v255, 0.0
        %v281 = vadd.f32 %v279, %v280
        %v282 = vsel %vm207, %v256, 0.0
        %v283 = vadd.f32 %v281, %v282
        %v284 = vsel %vm207, %v257, 0.0
        %v285 = vadd.f32 %v283, %v284
        %v286 = vsel %vm207, %v258, 0.0
        %v287 = vadd.f32 %v285, %v286
        %v288 = vsel %vm207, %v259, 0.0
        %v289 = vadd.f32 %v287, %v288
        %v290 = vsel %vm207, %v260, 0.0
        %v291 = vadd.f32 %v289, %v290
        %v292 = vrot.slane %v291, 4
        %v293 = vadd.f32 %v291, %v292
        %v294 = vrot.slane %v293, 2
        %v295 = vadd.f32 %v293, %v294
        %v296 = vrot.slane %v295, 1
        %v297 = vadd.f32 %v295, %v296
        %p298 = scmp.eq.s32.totalorder %s28, 0
        // Predicated region
        $region29: #{tpu_custom_call.1} parent=23 // pred_check
          %p299 = pneg %p298
        $region30: #{tpu_custom_call.1} parent=23 // pred_check_branch
          %301 = sbr.rel (%p299) target = $region32
        $region31: #{tpu_custom_call.1} parent=23 // pred_region
          %vm302 = vcmask 253952
          %303 = vst.msk [vmem:[%s183] sm:$0x1] %vm302, %v244
          %304 = vst.msk [vmem:[%s189] sm:$0x1] %vm302, %v297
        $region32: #{tpu_custom_call.1} parent=23 // pred_fallthru
          _
        %p305 = scmp.gt.s32.totalorder %s28, 0
        // Predicated region
        $region33: #{tpu_custom_call.1} parent=23 // pred_check
          %p306 = pneg %p305
        $region34: #{tpu_custom_call.1} parent=23 // pred_check_branch
          %308 = sbr.rel (%p306) target = $region36
        $region35: #{tpu_custom_call.1} parent=23 // pred_region
          %v309 = vld [vmem:[%s183] sm:$0x1]
          %v310 = vadd.f32 %v309, %v244
          %vm311 = vcmask 253952
          %312 = vst.msk [vmem:[%s183] sm:$0x1] %vm311, %v310
          %v313 = vld [vmem:[%s189] sm:$0x1]
          %v314 = vadd.f32 %v313, %v297
          %315 = vst.msk [vmem:[%s189] sm:$0x1] %vm311, %v314
        $region36: #{tpu_custom_call.1} parent=23 // pred_fallthru
          _
        %s316 = sand.u32 %s71, 1
        %s317 = scalar_lea.sflag [#allocation4], %s316
        %s318 = sand.u32 %s71, 1
        %s319 = scalar_lea.vmem [#allocation5], %s318
        %s320 = sand.u32 %s97, 1
        %s321 = scalar_lea.sflag [#allocation7], %s320
        %s322 = sand.u32 %s97, 1
        %s323 = scalar_lea.vmem [#allocation6], %s322
        // Predicated region
        $region37: #{tpu_custom_call.1} parent=23 // pred_check
          %p324 = pneg %p81
        $region38: #{tpu_custom_call.1} parent=23 // pred_check_branch
          %326 = sbr.rel (%p324) target = $region40
        $region39: #{tpu_custom_call.1} parent=23 // pred_region
          %328 = vsyncadd %s317, 0
          %s329 = scalar_lea.hbm %s1, %s27
          %s331 = sshll.u32 %s319, 4
          %s332 = int_to_ptr.vmem [resolvable:$true] %s331
          %s333 = sshll.u32 %s329, 4
          %s334 = int_to_ptr.hbm [resolvable:$true] %s333
          %336 = dma.vmem_to_hbm [thread:$0]  %s332, 16, %s334, %s317
        $region40: #{tpu_custom_call.1} parent=23 // pred_fallthru
          _
        // Predicated region
        $region41: #{tpu_custom_call.1} parent=23 // pred_check
          %p337 = pneg %p107
        $region42: #{tpu_custom_call.1} parent=23 // pred_check_branch
          %339 = sbr.rel (%p337) target = $region44
        $region43: #{tpu_custom_call.1} parent=23 // pred_region
          %341 = vsyncadd %s321, 0
          %s342 = scalar_lea.hbm %s2, %s27
          %s344 = sshll.u32 %s323, 4
          %s345 = int_to_ptr.vmem [resolvable:$true] %s344
          %s346 = sshll.u32 %s342, 4
          %s347 = int_to_ptr.hbm [resolvable:$true] %s346
          %349 = dma.vmem_to_hbm [thread:$0]  %s345, 16, %s347, %s321
        $region44: #{tpu_custom_call.1} parent=23 // pred_fallthru
          _
      $region24: #{tpu_custom_call.1} parent=5 // pred_fallthru
        _
      %p350 = scmp.le.s32.totalorder 2, %s18
      // Predicated region
      $region45: #{tpu_custom_call.1} parent=5 // pred_check
        %p351 = pneg %p350
      $region46: #{tpu_custom_call.1} parent=5 // pred_check_branch
        %353 = sbr.rel (%p351) target = $region48
      $region47: #{tpu_custom_call.1} parent=5 // pred_region
        %s354 = ssub.s32 %s18, 2
        // Predicated region
        $region49: #{tpu_custom_call.1} parent=47 // pred_check
          %p355 = pneg %p87
        $region50: #{tpu_custom_call.1} parent=47 // pred_check_branch
          %357 = sbr.rel (%p355) target = $region52
        $region51: #{tpu_custom_call.1} parent=47 // pred_region
          %s358 = sand.u32 %s72, 1
          %s359 = scalar_lea.sflag [#allocation4], %s358
          %s360 = sand.u32 %s72, 1
          %s361 = scalar_lea.vmem [#allocation5], %s360
          %363 = dma.done %s359, 16
        $region52: #{tpu_custom_call.1} parent=47 // pred_fallthru
          _
        // Predicated region
        $region53: #{tpu_custom_call.1} parent=47 // pred_check
          %p364 = pneg %p113
        $region54: #{tpu_custom_call.1} parent=47 // pred_check_branch
          %366 = sbr.rel (%p364) target = $region56
        $region55: #{tpu_custom_call.1} parent=47 // pred_region
          %s367 = sand.u32 %s98, 1
          %s368 = scalar_lea.sflag [#allocation7], %s367
          %s369 = sand.u32 %s98, 1
          %s370 = scalar_lea.vmem [#allocation6], %s369
          %372 = dma.done %s368, 16
        $region56: #{tpu_custom_call.1} parent=47 // pred_fallthru
          _
      $region48: #{tpu_custom_call.1} parent=5 // pred_fallthru
        _
    $region6: #{tpu_custom_call.1} parent=1 // loop_footer
      %s22 = sadd.s32 1, %s18
    $region7: #{tpu_custom_call.1} parent=1 // loop_footer_branch
      %17 = sbr.rel target = $region3
    $region8: #{tpu_custom_call.1} parent=1 // loop_exit
      _
    %373 = vsyncpa [#allocation3], 1
    %s374 = scalar_lea.sflag [#allocation3], 1
    %375 = vsyncpa %s374, 1
    %376 = vsyncpa [#allocation4], 1
    %s377 = scalar_lea.sflag [#allocation4], 1
    %378 = vsyncpa %s377, 1
    %379 = vsyncpa [#allocation7], 1
    %s380 = scalar_lea.sflag [#allocation7], 1
    %381 = vsyncpa %s380, 1

</llo_original>
